<compile_context>
chip_gen: v5e
topology: v5e:2x2
jax: 0.10.0
libtpu: 0.0.40
codegen_flags: <defaults>
</compile_context>

<pallas_src>
import jax
import jax.numpy as jnp
from jax.experimental import pallas as pl
from jax.experimental.pallas import tpu as pltpu

EPS = 1e-5
LANE = 128


def _round_up(n, m=LANE):
    return ((n + m - 1) // m) * m


def _bn_relu(h, gamma, beta, n_rows):
    """Single-pass training-mode BatchNorm1d + ReLU.

    Biased batch variance (matches PyTorch BN1d normalization in training).
    gamma*rsqrt(var+eps) is folded into one scale; beta - mean*scale into one
    shift, so the apply is a single fused multiply-add + max.
    """
    inv_n = 1.0 / n_rows
    s = jnp.sum(h, axis=0, keepdims=True)
    sq = jnp.sum(h * h, axis=0, keepdims=True)
    mean = s * inv_n
    var = jnp.maximum(sq * inv_n - mean * mean, 0.0)
    inv = jax.lax.rsqrt(var + EPS)
    scale = gamma * inv
    shift = beta - mean * scale
    return jnp.maximum(h * scale + shift, 0.0)


def mlp_kernel(x_ref, w1_ref, w2_ref, w3_ref, vec_ref, o_ref):
    # vec_ref rows: 0=b1, 1=g1, 2=be1, 3=b2, 4=g2, 5=be2, 6=b3, 7=pad
    x = x_ref[...]
    vec = vec_ref[...]
    n = float(x_ref.shape[0])
    hp = w1_ref.shape[1]   # padded hidden width (multiple of 128)
    op = w3_ref.shape[1]   # padded output width (multiple of 128)

    # --- layer 1: linear + batchnorm + relu ---
    h = jnp.dot(x, w1_ref[...], preferred_element_type=jnp.float32) + vec[0:1, :hp]
    h = _bn_relu(h, vec[1:2, :hp], vec[2:3, :hp], n)

    # --- layer 2: linear + batchnorm + relu ---
    h = jnp.dot(h, w2_ref[...], preferred_element_type=jnp.float32) + vec[3:4, :hp]
    h = _bn_relu(h, vec[4:5, :hp], vec[5:6, :hp], n)

    # --- layer 3: linear (lane-dense padded output) ---
    out = jnp.dot(h, w3_ref[...], preferred_element_type=jnp.float32) + vec[6:7, :op]
    o_ref[...] = out.astype(o_ref.dtype)


def mlp_forward(x, params):
    """x: (B, input_size) float32. Returns squeezed (B, 6) like the PyTorch model."""
    (w1, b1, g1, be1, w2, b2, g2, be2, w3, b3) = params
    B, in_dim = x.shape
    hidden = w1.shape[1]
    out_dim = w3.shape[1]

    in_p = _round_up(in_dim)
    h_p = _round_up(hidden)
    o_p = _round_up(out_dim)
    f_p = max(h_p, o_p)

    def pad2(a, rows, cols):
        return jnp.pad(a, ((0, rows - a.shape[0]), (0, cols - a.shape[1])))

    # Zero padding keeps the math exact: padded weight columns/rows are zero,
    # padded gamma/beta/bias are zero, so padded lanes stay identically zero
    # through BN (mean=var=0 -> scale=0, shift=0) and ReLU.
    x_p = pad2(x, B, in_p)
    w1_p = pad2(w1, in_p, h_p)
    w2_p = pad2(w2, h_p, h_p)
    w3_p = pad2(w3, h_p, o_p)

    def row(v, width):
        return pad2(v.reshape(1, -1).astype(jnp.float32), 1, width)

    vec = jnp.concatenate(
        [row(b1, f_p), row(g1, f_p), row(be1, f_p),
         row(b2, f_p), row(g2, f_p), row(be2, f_p),
         row(b3, f_p), jnp.zeros((1, f_p), jnp.float32)],
        axis=0)  # (8, f_p) — single coalesced DMA for all small params

    full = lambda shape: pl.BlockSpec(shape, lambda: (0,) * len(shape))

    out = pl.pallas_call(
        mlp_kernel,
        out_shape=jax.ShapeDtypeStruct((B, o_p), jnp.float32),
        grid=(),
        in_specs=[full(x_p.shape), full(w1_p.shape), full(w2_p.shape),
                  full(w3_p.shape), full(vec.shape)],
        out_specs=full((B, o_p)),
    )(x_p, w1_p, w2_p, w3_p, vec)

    # Slice back to the true output width, then squeeze (matches torch .squeeze()).
    return jnp.squeeze(out[:, :out_dim])


def init_params(key, input_size, interm_layer_size, out_size=6):
    """PyTorch-default Linear init U(-1/sqrt(fan_in), 1/sqrt(fan_in));
    BatchNorm: gamma=1, beta=0. Weights stored as (in, out)."""
    ks = jax.random.split(key, 6)

    def linear(kw, kb, fan_in, fan_out):
        bound = 1.0 / jnp.sqrt(fan_in)
        w = jax.random.uniform(kw, (fan_in, fan_out), jnp.float32, -bound, bound)
        b = jax.random.uniform(kb, (1, fan_out), jnp.float32, -bound, bound)
        return w, b

    w1, b1 = linear(ks[0], ks[1], input_size, interm_layer_size)
    w2, b2 = linear(ks[2], ks[3], interm_layer_size, interm_layer_size)
    w3, b3 = linear(ks[4], ks[5], interm_layer_size, out_size)

    g1 = jnp.ones((1, interm_layer_size), jnp.float32)
    be1 = jnp.zeros((1, interm_layer_size), jnp.float32)
    g2 = jnp.ones((1, interm_layer_size), jnp.float32)
    be2 = jnp.zeros((1, interm_layer_size), jnp.float32)

    return (w1, b1, g1, be1, w2, b2, g2, be2, w3, b3)


def reference_forward(x, params):
    """Pure-JAX reference mirroring the PyTorch forward (training-mode BN)."""
    (w1, b1, g1, be1, w2, b2, g2, be2, w3, b3) = params

    def bn(h, gamma, beta):
        mean = jnp.mean(h, axis=0, keepdims=True)
        centered = h - mean
        var = jnp.mean(centered * centered, axis=0, keepdims=True)
        return centered * jax.lax.rsqrt(var + EPS) * gamma + beta

    h = x @ w1 + b1
    h = jnp.maximum(bn(h, g1, be1), 0.0)
    h = h @ w2 + b2
    h = jnp.maximum(bn(h, g2, be2), 0.0)
    out = h @ w3 + b3
    return jnp.squeeze(out)


if __name__ == "__main__":
    key = jax.random.PRNGKey(0)
    k_x, k_p = jax.random.split(key)

    batch = 8
    input_size = 32
    interm = 32

    x = jax.random.normal(k_x, (batch, input_size), jnp.float32)
    params = init_params(k_p, input_size, interm)

    out = mlp_forward(x, params)
    out = jax.block_until_ready(out)

    ref = reference_forward(x, params)
    assert out.shape == (batch, 6), out.shape
    assert jnp.allclose(out, ref, atol=1e-4, rtol=1e-4), "mismatch vs reference"

    print("KERNEL_OK")
</pallas_src>

<mosaic_0001>
module attributes {stable_mosaic.version = 11 : i64} {
  func.func @mlp_kernel(%arg0: memref<8x128xf32, #tpu.memory_space<vmem>>, %arg1: memref<128x128xf32, #tpu.memory_space<vmem>>, %arg2: memref<128x128xf32, #tpu.memory_space<vmem>>, %arg3: memref<128x128xf32, #tpu.memory_space<vmem>>, %arg4: memref<8x128xf32, #tpu.memory_space<vmem>>, %arg5: memref<8x128xf32, #tpu.memory_space<vmem>>) attributes {dimension_semantics = [], scalar_prefetch = 0 : i64, scratch_operands = 0 : i64, tpu.core_type = #tpu.core_type<tc>} {
    %c0 = arith.constant 0 : index
    %c0_0 = arith.constant 0 : index
    %0 = vector.load %arg0[%c0, %c0_0] : memref<8x128xf32, #tpu.memory_space<vmem>>, vector<8x128xf32>
    %c0_1 = arith.constant 0 : index
    %c0_2 = arith.constant 0 : index
    %1 = vector.load %arg4[%c0_1, %c0_2] : memref<8x128xf32, #tpu.memory_space<vmem>>, vector<8x128xf32>
    %c0_3 = arith.constant 0 : index
    %c0_4 = arith.constant 0 : index
    %2 = vector.load %arg1[%c0_3, %c0_4] : memref<128x128xf32, #tpu.memory_space<vmem>>, vector<128x128xf32>
    %cst = arith.constant dense<0.000000e+00> : vector<8x128xf32>
    %3 = tpu.matmul %0, %2, %cst {dimension_numbers = #tpu.dot_dimension_numbers<[1], [0], [0], [1], [0, 0, 1, 1], [], []>} : vector<8x128xf32>, vector<128x128xf32>, vector<8x128xf32> -> vector<8x128xf32>
    %4 = vector.extract_strided_slice %1 {offsets = [0, 0], sizes = [1, 128], strides = [1, 1]} : vector<8x128xf32> to vector<1x128xf32>
    %5 = vector.broadcast %4 : vector<1x128xf32> to vector<8x128xf32>
    %6 = arith.addf %3, %5 : vector<8x128xf32>
    %7 = vector.extract_strided_slice %1 {offsets = [1, 0], sizes = [1, 128], strides = [1, 1]} : vector<8x128xf32> to vector<1x128xf32>
    %8 = vector.extract_strided_slice %1 {offsets = [2, 0], sizes = [1, 128], strides = [1, 1]} : vector<8x128xf32> to vector<1x128xf32>
    %cst_5 = arith.constant dense<0.000000e+00> : vector<128xf32>
    %9 = vector.multi_reduction <add>, %6, %cst_5 [0] : vector<8x128xf32> to vector<128xf32>
    %10 = vector.shape_cast %9 : vector<128xf32> to vector<1x128xf32>
    %11 = arith.mulf %6, %6 : vector<8x128xf32>
    %cst_6 = arith.constant dense<0.000000e+00> : vector<128xf32>
    %12 = vector.multi_reduction <add>, %11, %cst_6 [0] : vector<8x128xf32> to vector<128xf32>
    %13 = vector.shape_cast %12 : vector<128xf32> to vector<1x128xf32>
    %cst_7 = arith.constant 1.250000e-01 : f32
    %14 = vector.broadcast %cst_7 : f32 to vector<1x128xf32>
    %15 = arith.mulf %10, %14 : vector<1x128xf32>
    %cst_8 = arith.constant 1.250000e-01 : f32
    %16 = vector.broadcast %cst_8 : f32 to vector<1x128xf32>
    %17 = arith.mulf %13, %16 : vector<1x128xf32>
    %18 = arith.mulf %15, %15 : vector<1x128xf32>
    %19 = arith.subf %17, %18 : vector<1x128xf32>
    %cst_9 = arith.constant 0.000000e+00 : f32
    %20 = vector.broadcast %cst_9 : f32 to vector<1x128xf32>
    %21 = arith.maximumf %19, %20 : vector<1x128xf32>
    %cst_10 = arith.constant 9.99999974E-6 : f32
    %22 = vector.broadcast %cst_10 : f32 to vector<1x128xf32>
    %23 = arith.addf %21, %22 : vector<1x128xf32>
    %24 = math.rsqrt %23 : vector<1x128xf32>
    %25 = arith.mulf %7, %24 : vector<1x128xf32>
    %26 = arith.mulf %15, %25 : vector<1x128xf32>
    %27 = arith.subf %8, %26 : vector<1x128xf32>
    %28 = vector.broadcast %25 : vector<1x128xf32> to vector<8x128xf32>
    %29 = arith.mulf %6, %28 : vector<8x128xf32>
    %30 = vector.broadcast %27 : vector<1x128xf32> to vector<8x128xf32>
    %31 = arith.addf %29, %30 : vector<8x128xf32>
    %cst_11 = arith.constant 0.000000e+00 : f32
    %32 = vector.broadcast %cst_11 : f32 to vector<8x128xf32>
    %33 = arith.maximumf %31, %32 : vector<8x128xf32>
    %c0_12 = arith.constant 0 : index
    %c0_13 = arith.constant 0 : index
    %34 = vector.load %arg2[%c0_12, %c0_13] : memref<128x128xf32, #tpu.memory_space<vmem>>, vector<128x128xf32>
    %cst_14 = arith.constant dense<0.000000e+00> : vector<8x128xf32>
    %35 = tpu.matmul %33, %34, %cst_14 {dimension_numbers = #tpu.dot_dimension_numbers<[1], [0], [0], [1], [0, 0, 1, 1], [], []>} : vector<8x128xf32>, vector<128x128xf32>, vector<8x128xf32> -> vector<8x128xf32>
    %36 = vector.extract_strided_slice %1 {offsets = [3, 0], sizes = [1, 128], strides = [1, 1]} : vector<8x128xf32> to vector<1x128xf32>
    %37 = vector.broadcast %36 : vector<1x128xf32> to vector<8x128xf32>
    %38 = arith.addf %35, %37 : vector<8x128xf32>
    %39 = vector.extract_strided_slice %1 {offsets = [4, 0], sizes = [1, 128], strides = [1, 1]} : vector<8x128xf32> to vector<1x128xf32>
    %40 = vector.extract_strided_slice %1 {offsets = [5, 0], sizes = [1, 128], strides = [1, 1]} : vector<8x128xf32> to vector<1x128xf32>
    %cst_15 = arith.constant dense<0.000000e+00> : vector<128xf32>
    %41 = vector.multi_reduction <add>, %38, %cst_15 [0] : vector<8x128xf32> to vector<128xf32>
    %42 = vector.shape_cast %41 : vector<128xf32> to vector<1x128xf32>
    %43 = arith.mulf %38, %38 : vector<8x128xf32>
    %cst_16 = arith.constant dense<0.000000e+00> : vector<128xf32>
    %44 = vector.multi_reduction <add>, %43, %cst_16 [0] : vector<8x128xf32> to vector<128xf32>
    %45 = vector.shape_cast %44 : vector<128xf32> to vector<1x128xf32>
    %cst_17 = arith.constant 1.250000e-01 : f32
    %46 = vector.broadcast %cst_17 : f32 to vector<1x128xf32>
    %47 = arith.mulf %42, %46 : vector<1x128xf32>
    %cst_18 = arith.constant 1.250000e-01 : f32
    %48 = vector.broadcast %cst_18 : f32 to vector<1x128xf32>
    %49 = arith.mulf %45, %48 : vector<1x128xf32>
    %50 = arith.mulf %47, %47 : vector<1x128xf32>
    %51 = arith.subf %49, %50 : vector<1x128xf32>
    %cst_19 = arith.constant 0.000000e+00 : f32
    %52 = vector.broadcast %cst_19 : f32 to vector<1x128xf32>
    %53 = arith.maximumf %51, %52 : vector<1x128xf32>
    %cst_20 = arith.constant 9.99999974E-6 : f32
    %54 = vector.broadcast %cst_20 : f32 to vector<1x128xf32>
    %55 = arith.addf %53, %54 : vector<1x128xf32>
    %56 = math.rsqrt %55 : vector<1x128xf32>
    %57 = arith.mulf %39, %56 : vector<1x128xf32>
    %58 = arith.mulf %47, %57 : vector<1x128xf32>
    %59 = arith.subf %40, %58 : vector<1x128xf32>
    %60 = vector.broadcast %57 : vector<1x128xf32> to vector<8x128xf32>
    %61 = arith.mulf %38, %60 : vector<8x128xf32>
    %62 = vector.broadcast %59 : vector<1x128xf32> to vector<8x128xf32>
    %63 = arith.addf %61, %62 : vector<8x128xf32>
    %cst_21 = arith.constant 0.000000e+00 : f32
    %64 = vector.broadcast %cst_21 : f32 to vector<8x128xf32>
    %65 = arith.maximumf %63, %64 : vector<8x128xf32>
    %c0_22 = arith.constant 0 : index
    %c0_23 = arith.constant 0 : index
    %66 = vector.load %arg3[%c0_22, %c0_23] : memref<128x128xf32, #tpu.memory_space<vmem>>, vector<128x128xf32>
    %cst_24 = arith.constant dense<0.000000e+00> : vector<8x128xf32>
    %67 = tpu.matmul %65, %66, %cst_24 {dimension_numbers = #tpu.dot_dimension_numbers<[1], [0], [0], [1], [0, 0, 1, 1], [], []>} : vector<8x128xf32>, vector<128x128xf32>, vector<8x128xf32> -> vector<8x128xf32>
    %68 = vector.extract_strided_slice %1 {offsets = [6, 0], sizes = [1, 128], strides = [1, 1]} : vector<8x128xf32> to vector<1x128xf32>
    %69 = vector.broadcast %68 : vector<1x128xf32> to vector<8x128xf32>
    %70 = arith.addf %67, %69 : vector<8x128xf32>
    %c0_25 = arith.constant 0 : index
    %c0_26 = arith.constant 0 : index
    %71 = vector.load %arg5[%c0_25, %c0_26] : memref<8x128xf32, #tpu.memory_space<vmem>>, vector<8x128xf32>
    tpu.vector_store %arg5[%c0_25, %c0_26], %70 {strides = array<i32>} : memref<8x128xf32, #tpu.memory_space<vmem>>, vector<8x128xf32>,
    return
  }
}

</mosaic_0001>

<llo_original>
// kernel: tpu_custom_call.1
$region0: #{tpu_custom_call.1}
  #allocation0 [shape = 'u32[]', space=smem, size = 0x4, offset = 0x4, fixed_abs, tag = 'smem constant byte address 0x4 - core index']
  #allocation1 [shape = 'u32[72,128]{1,0:T(1,128)}', space=vmem, size = 0x9000, scoped, tag = 'internal scratch']
  %s0 = inlined_call_operand.hbm [shape: f32[8,128], index: 0, kind: input, shape index: {}]
  %s1 = inlined_call_operand.hbm [shape: f32[128,128], index: 1, kind: input, shape index: {}]
  %s2 = inlined_call_operand.hbm [shape: f32[128,128], index: 2, kind: input, shape index: {}]
  %s3 = inlined_call_operand.hbm [shape: f32[128,128], index: 3, kind: input, shape index: {}]
  %s4 = inlined_call_operand.hbm [shape: f32[8,128], index: 4, kind: input, shape index: {}]
  %s5 = inlined_call_operand.hbm [shape: f32[8,128], index: 5, kind: output, shape index: {}]
  %s6 = sld [smem:[#allocation0]]
  $region50: #{tpu_custom_call.1} parent=0
    _
  %s8 = ssub.s32 1, %s6
  %s9 = scalar_select 0, %s8, %s6
  $region1: #{tpu_custom_call.1} parent=0
    #allocation2 [shape = 'u8[4096]{0}', space=vmem, size = 0x1000, scoped, tag = 'input window, operand 0, single buffered']
    #allocation3 [shape = 's32[1]{0}', space=sflag, size = 0x4, scoped, tag = 'scoped memory for tpu_custom_call.1']
    #allocation4 [shape = 's32[1]{0}', space=sflag, size = 0x4, scoped, tag = 'scoped memory for tpu_custom_call.1']
    #allocation5 [shape = 'u8[65536]{0}', space=vmem, size = 0x10000, scoped, tag = 'input window, operand 1, single buffered']
    #allocation6 [shape = 's32[1]{0}', space=sflag, size = 0x4, scoped, tag = 'scoped memory for tpu_custom_call.1']
    #allocation7 [shape = 'u8[65536]{0}', space=vmem, size = 0x10000, scoped, tag = 'input window, operand 2, single buffered']
    #allocation8 [shape = 'u8[65536]{0}', space=vmem, size = 0x10000, scoped, tag = 'input window, operand 3, single buffered']
    #allocation9 [shape = 's32[1]{0}', space=sflag, size = 0x4, scoped, tag = 'scoped memory for tpu_custom_call.1']
    #allocation10 [shape = 'u8[4096]{0}', space=vmem, size = 0x1000, scoped, tag = 'input window, operand 4, single buffered']
    #allocation11 [shape = 'u8[4096]{0}', space=vmem, size = 0x1000, scoped, tag = 'output window, operand 0, single buffered']
    %10 = vsyncpa [#allocation3], 0
    %11 = vsyncpa [#allocation6], 0
    %12 = vsyncpa [#allocation9], 0
    %13 = vsyncpa [#allocation4], 0
    // Predicated region
    $region2: #{tpu_custom_call.1} parent=1 // pred_check
      _
    $region3: #{tpu_custom_call.1} parent=1 // pred_check_branch
      %15 = sbr.rel (0) target = $region5
    $region4: #{tpu_custom_call.1} parent=1 // pred_region
      %17 = vsyncadd [#allocation3], 0
      %s19 = sshll.u32 %s0, 4
      %s20 = int_to_ptr.hbm [resolvable:$true] %s19
      %s21 = sshll.u32 [#allocation2], 4
      %s22 = int_to_ptr.vmem [resolvable:$true] %s21
      %24 = dma.hbm_to_vmem [thread:$0]  %s20, 128, %s22, [#allocation3]
    $region5: #{tpu_custom_call.1} parent=1 // pred_fallthru
      _
    // Predicated region
    $region6: #{tpu_custom_call.1} parent=1 // pred_check
      _
    $region7: #{tpu_custom_call.1} parent=1 // pred_check_branch
      %26 = sbr.rel (0) target = $region9
    $region8: #{tpu_custom_call.1} parent=1 // pred_region
      %28 = vsyncadd [#allocation6], 0
      %s29 = sshll.u32 %s1, 4
      %s30 = int_to_ptr.hbm [resolvable:$true] %s29
      %s31 = sshll.u32 [#allocation5], 4
      %s32 = int_to_ptr.vmem [resolvable:$true] %s31
      %37 = dma.hbm_to_vmem [thread:$0]  %s30, 2048, %s32, [#allocation6], 128, 128, 8
    $region9: #{tpu_custom_call.1} parent=1 // pred_fallthru
      _
    // Predicated region
    $region10: #{tpu_custom_call.1} parent=1 // pred_check
      _
    $region11: #{tpu_custom_call.1} parent=1 // pred_check_branch
      %39 = sbr.rel (0) target = $region13
    $region12: #{tpu_custom_call.1} parent=1 // pred_region
      %41 = vsyncadd [#allocation6], 0
      %s42 = sshll.u32 %s2, 4
      %s43 = int_to_ptr.hbm [resolvable:$true] %s42
      %s44 = sshll.u32 [#allocation7], 4
      %s45 = int_to_ptr.vmem [resolvable:$true] %s44
      %50 = dma.hbm_to_vmem [thread:$0]  %s43, 2048, %s45, [#allocation6], 128, 128, 8
    $region13: #{tpu_custom_call.1} parent=1 // pred_fallthru
      _
    // Predicated region
    $region14: #{tpu_custom_call.1} parent=1 // pred_check
      _
    $region15: #{tpu_custom_call.1} parent=1 // pred_check_branch
      %52 = sbr.rel (0) target = $region17
    $region16: #{tpu_custom_call.1} parent=1 // pred_region
      %54 = vsyncadd [#allocation9], 0
      %s55 = sshll.u32 %s3, 4
      %s56 = int_to_ptr.hbm [resolvable:$true] %s55
      %s57 = sshll.u32 [#allocation8], 4
      %s58 = int_to_ptr.vmem [resolvable:$true] %s57
      %63 = dma.hbm_to_vmem [thread:$0]  %s56, 2048, %s58, [#allocation9], 128, 128, 8
    $region17: #{tpu_custom_call.1} parent=1 // pred_fallthru
      _
    // Predicated region
    $region18: #{tpu_custom_call.1} parent=1 // pred_check
      _
    $region19: #{tpu_custom_call.1} parent=1 // pred_check_branch
      %65 = sbr.rel (0) target = $region21
    $region20: #{tpu_custom_call.1} parent=1 // pred_region
      %67 = vsyncadd [#allocation9], 0
      %s69 = sshll.u32 %s4, 4
      %s70 = int_to_ptr.hbm [resolvable:$true] %s69
      %s71 = sshll.u32 [#allocation10], 4
      %s72 = int_to_ptr.vmem [resolvable:$true] %s71
      %74 = dma.hbm_to_vmem [thread:$0]  %s70, 128, %s72, [#allocation9]
    $region21: #{tpu_custom_call.1} parent=1 // pred_fallthru
      _
    // Predicated region
    $region22: #{tpu_custom_call.1} parent=1 // pred_check
      _
    $region23: #{tpu_custom_call.1} parent=1 // pred_check_branch
      %76 = sbr.rel (0) target = $region25
    $region24: #{tpu_custom_call.1} parent=1 // pred_region
      %78 = dma.done [#allocation3], 128
    $region25: #{tpu_custom_call.1} parent=1 // pred_fallthru
      _
    // Predicated region
    $region26: #{tpu_custom_call.1} parent=1 // pred_check
      _
    $region27: #{tpu_custom_call.1} parent=1 // pred_check_branch
      %80 = sbr.rel (0) target = $region29
    $region28: #{tpu_custom_call.1} parent=1 // pred_region
      %82 = dma.done [#allocation6], 2048
    $region29: #{tpu_custom_call.1} parent=1 // pred_fallthru
      _
    // Predicated region
    $region30: #{tpu_custom_call.1} parent=1 // pred_check
      _
    $region31: #{tpu_custom_call.1} parent=1 // pred_check_branch
      %84 = sbr.rel (0) target = $region33
    $region32: #{tpu_custom_call.1} parent=1 // pred_region
      %86 = dma.done [#allocation6], 2048
    $region33: #{tpu_custom_call.1} parent=1 // pred_fallthru
      _
    // Predicated region
    $region34: #{tpu_custom_call.1} parent=1 // pred_check
      _
    $region35: #{tpu_custom_call.1} parent=1 // pred_check_branch
      %88 = sbr.rel (0) target = $region37
    $region36: #{tpu_custom_call.1} parent=1 // pred_region
      %90 = dma.done [#allocation9], 2048
    $region37: #{tpu_custom_call.1} parent=1 // pred_fallthru
      _
    // Predicated region
    $region38: #{tpu_custom_call.1} parent=1 // pred_check
      _
    $region39: #{tpu_custom_call.1} parent=1 // pred_check_branch
      %92 = sbr.rel (0) target = $region41
    $region40: #{tpu_custom_call.1} parent=1 // pred_region
      %94 = dma.done [#allocation9], 128
    $region41: #{tpu_custom_call.1} parent=1 // pred_fallthru
      _
    %v95 = vld [vmem:[#allocation2] sm:$0xff]
    %v96 = vld [vmem:[#allocation10] sm:$0xff]
    %v97 = vld [vmem:[#allocation5] sm:$0xff]
    %v98 = vld [vmem:[#allocation5 + $0x8] sm:$0xff]
    %v99 = vld [vmem:[#allocation5 + $0x10] sm:$0xff]
    %v100 = vld [vmem:[#allocation5 + $0x18] sm:$0xff]
    %v101 = vld [vmem:[#allocation5 + $0x20] sm:$0xff]
    %v102 = vld [vmem:[#allocation5 + $0x28] sm:$0xff]
    %v103 = vld [vmem:[#allocation5 + $0x30] sm:$0xff]
    %v104 = vld [vmem:[#allocation5 + $0x38] sm:$0xff]
    %v105 = vld [vmem:[#allocation5 + $0x40] sm:$0xff]
    %v106 = vld [vmem:[#allocation5 + $0x48] sm:$0xff]
    %v107 = vld [vmem:[#allocation5 + $0x50] sm:$0xff]
    %v108 = vld [vmem:[#allocation5 + $0x58] sm:$0xff]
    %v109 = vld [vmem:[#allocation5 + $0x60] sm:$0xff]
    %v110 = vld [vmem:[#allocation5 + $0x68] sm:$0xff]
    %v111 = vld [vmem:[#allocation5 + $0x70] sm:$0xff]
    %v112 = vld [vmem:[#allocation5 + $0x78] sm:$0xff]
    %v113 = vperm.slane %v96, 0
    %114 = vmatpush.msra.mxu0 %v112
    %115 = vmatpush.msra.mxu0 %v111
    %116 = vmatpush.msra.mxu0 %v110
    %117 = vmatpush.msra.mxu0 %v109
    %118 = vmatpush.msra.mxu0 %v108
    %119 = vmatpush.msra.mxu0 %v107
    %120 = vmatpush.msra.mxu0 %v106
    %121 = vmatpush.msra.mxu0 %v105
    %122 = vmatpush.msra.mxu0 %v104
    %123 = vmatpush.msra.mxu0 %v103
    %124 = vmatpush.msra.mxu0 %v102
    %125 = vmatpush.msra.mxu0 %v101
    %126 = vmatpush.msra.mxu0 %v100
    %127 = vmatpush.msra.mxu0 %v99
    %128 = vmatpush.msra.mxu0 %v98
    %129 = vmatpush.msra.mxu0 %v97
    %130 = vmatmul.f32.gmra.mxu0 %v95
    %v131 = vpop.f32.mrf.mxu0
    %v132 = vadd.f32 %v113, %v131
    %133 = vdwg.mxu0
    %v134 = vrot.slane %v132, 4
    %v135 = vadd.f32 %v132, %v134
    %v136 = vrot.slane %v135, 2
    %v137 = vadd.f32 %v135, %v136
    %v138 = vrot.slane %v137, 1
    %v139 = vadd.f32 %v137, %v138
    %v140 = vmul.f32 %v132, %v132
    %v141 = vrot.slane %v140, 4
    %v142 = vadd.f32 %v140, %v141
    %v143 = vrot.slane %v142, 2
    %v144 = vadd.f32 %v142, %v143
    %v145 = vrot.slane %v144, 1
    %v146 = vadd.f32 %v144, %v145
    %v147 = vmul.f32 %v139, 0.125
    %v148 = vmul.f32 %v146, 0.125
    %v149 = vmul.f32 %v147, %v147
    %v150 = vsub.f32 %v148, %v149
    %v151 = vmax.f32 %v150, 0.0
    %v152 = vadd.f32 %v151, 1e-05
    %v153 = vrsqrt.pop %v152
    %v154 = vmul.f32 %v153, %v152
    %v155 = vmul.f32 %v154, %v153
    %v156 = vmul.f32 0.5, %v155
    %v157 = vsub.f32 1.5, %v156
    %v158 = vmul.f32 %v153, %v157
    %vm159 = vweird.f32 %v152
    %vm160 = vweird.f32 %v153
    %vm161 = vmor %vm159, %vm160
    %v162 = vsel %vm161, %v153, %v158
    %v163 = vmul.f32 %v96, %v162
    %v164 = vmul.f32 %v147, %v163
    %v166 = vrot.slane %v164, 7
    %v168 = vsub.f32 %v96, %v166
    %v169 = vperm.slane %v163, 1
    %v170 = vmul.f32 %v132, %v169
    %v171 = vperm.slane %v168, 2
    %v172 = vadd.f32 %v170, %v171
    %v173 = vmax.f32 %v172, 0.0
    %v174 = vld [vmem:[#allocation7] sm:$0xff]
    %v175 = vld [vmem:[#allocation7 + $0x8] sm:$0xff]
    %v176 = vld [vmem:[#allocation7 + $0x10] sm:$0xff]
    %v177 = vld [vmem:[#allocation7 + $0x18] sm:$0xff]
    %v178 = vld [vmem:[#allocation7 + $0x20] sm:$0xff]
    %v179 = vld [vmem:[#allocation7 + $0x28] sm:$0xff]
    %v180 = vld [vmem:[#allocation7 + $0x30] sm:$0xff]
    %v181 = vld [vmem:[#allocation7 + $0x38] sm:$0xff]
    %v182 = vld [vmem:[#allocation7 + $0x40] sm:$0xff]
    %v183 = vld [vmem:[#allocation7 + $0x48] sm:$0xff]
    %v184 = vld [vmem:[#allocation7 + $0x50] sm:$0xff]
    %v185 = vld [vmem:[#allocation7 + $0x58] sm:$0xff]
    %v186 = vld [vmem:[#allocation7 + $0x60] sm:$0xff]
    %v187 = vld [vmem:[#allocation7 + $0x68] sm:$0xff]
    %v188 = vld [vmem:[#allocation7 + $0x70] sm:$0xff]
    %v189 = vld [vmem:[#allocation7 + $0x78] sm:$0xff]
    %v190 = vperm.slane %v96, 3
    %191 = vmatpush.msra.mxu0 %v189
    %192 = vmatpush.msra.mxu0 %v188
    %193 = vmatpush.msra.mxu0 %v187
    %194 = vmatpush.msra.mxu0 %v186
    %195 = vmatpush.msra.mxu0 %v185
    %196 = vmatpush.msra.mxu0 %v184
    %197 = vmatpush.msra.mxu0 %v183
    %198 = vmatpush.msra.mxu0 %v182
    %199 = vmatpush.msra.mxu0 %v181
    %200 = vmatpush.msra.mxu0 %v180
    %201 = vmatpush.msra.mxu0 %v179
    %202 = vmatpush.msra.mxu0 %v178
    %203 = vmatpush.msra.mxu0 %v177
    %204 = vmatpush.msra.mxu0 %v176
    %205 = vmatpush.msra.mxu0 %v175
    %206 = vmatpush.msra.mxu0 %v174
    %207 = vmatmul.f32.gmra.mxu0 %v173
    %v208 = vpop.f32.mrf.mxu0
    %v209 = vadd.f32 %v190, %v208
    %210 = vdwg.mxu0
    %v211 = vrot.slane %v209, 4
    %v212 = vadd.f32 %v209, %v211
    %v213 = vrot.slane %v212, 2
    %v214 = vadd.f32 %v212, %v213
    %v215 = vrot.slane %v214, 1
    %v216 = vadd.f32 %v214, %v215
    %v217 = vmul.f32 %v209, %v209
    %v218 = vrot.slane %v217, 4
    %v219 = vadd.f32 %v217, %v218
    %v220 = vrot.slane %v219, 2
    %v221 = vadd.f32 %v219, %v220
    %v222 = vrot.slane %v221, 1
    %v223 = vadd.f32 %v221, %v222
    %v224 = vmul.f32 %v216, 0.125
    %v225 = vmul.f32 %v223, 0.125
    %v226 = vmul.f32 %v224, %v224
    %v227 = vsub.f32 %v225, %v226
    %v228 = vmax.f32 %v227, 0.0
    %v229 = vadd.f32 %v228, 1e-05
    %v230 = vrsqrt.pop %v229
    %v231 = vmul.f32 %v230, %v229
    %v232 = vmul.f32 %v231, %v230
    %v233 = vmul.f32 0.5, %v232
    %v234 = vsub.f32 1.5, %v233
    %v235 = vmul.f32 %v230, %v234
    %vm236 = vweird.f32 %v229
    %vm237 = vweird.f32 %v230
    %vm238 = vmor %vm236, %vm237
    %v239 = vsel %vm238, %v230, %v235
    %v240 = vmul.f32 %v96, %v239
    %v241 = vmul.f32 %v224, %v240
    %v243 = vrot.slane %v241, 7
    %v245 = vsub.f32 %v96, %v243
    %v246 = vperm.slane %v240, 4
    %v247 = vmul.f32 %v209, %v246
    %v248 = vperm.slane %v245, 5
    %v249 = vadd.f32 %v247, %v248
    %v250 = vmax.f32 %v249, 0.0
    %v251 = vld [vmem:[#allocation8] sm:$0xff]
    %v252 = vld [vmem:[#allocation8 + $0x8] sm:$0xff]
    %v253 = vld [vmem:[#allocation8 + $0x10] sm:$0xff]
    %v254 = vld [vmem:[#allocation8 + $0x18] sm:$0xff]
    %v255 = vld [vmem:[#allocation8 + $0x20] sm:$0xff]
    %v256 = vld [vmem:[#allocation8 + $0x28] sm:$0xff]
    %v257 = vld [vmem:[#allocation8 + $0x30] sm:$0xff]
    %v258 = vld [vmem:[#allocation8 + $0x38] sm:$0xff]
    %v259 = vld [vmem:[#allocation8 + $0x40] sm:$0xff]
    %v260 = vld [vmem:[#allocation8 + $0x48] sm:$0xff]
    %v261 = vld [vmem:[#allocation8 + $0x50] sm:$0xff]
    %v262 = vld [vmem:[#allocation8 + $0x58] sm:$0xff]
    %v263 = vld [vmem:[#allocation8 + $0x60] sm:$0xff]
    %v264 = vld [vmem:[#allocation8 + $0x68] sm:$0xff]
    %v265 = vld [vmem:[#allocation8 + $0x70] sm:$0xff]
    %v266 = vld [vmem:[#allocation8 + $0x78] sm:$0xff]
    %v267 = vperm.slane %v96, 6
    %268 = vmatpush.msra.mxu0 %v266
    %269 = vmatpush.msra.mxu0 %v265
    %270 = vmatpush.msra.mxu0 %v264
    %271 = vmatpush.msra.mxu0 %v263
    %272 = vmatpush.msra.mxu0 %v262
    %273 = vmatpush.msra.mxu0 %v261
    %274 = vmatpush.msra.mxu0 %v260
    %275 = vmatpush.msra.mxu0 %v259
    %276 = vmatpush.msra.mxu0 %v258
    %277 = vmatpush.msra.mxu0 %v257
    %278 = vmatpush.msra.mxu0 %v256
    %279 = vmatpush.msra.mxu0 %v255
    %280 = vmatpush.msra.mxu0 %v254
    %281 = vmatpush.msra.mxu0 %v253
    %282 = vmatpush.msra.mxu0 %v252
    %283 = vmatpush.msra.mxu0 %v251
    %284 = vmatmul.f32.gmra.mxu0 %v250
    %v285 = vpop.f32.mrf.mxu0
    %v286 = vadd.f32 %v267, %v285
    %287 = vdwg.mxu0
    %288 = vst [vmem:[#allocation11] sm:$0xff] %v286
    // Predicated region
    $region42: #{tpu_custom_call.1} parent=1 // pred_check
      _
    $region43: #{tpu_custom_call.1} parent=1 // pred_check_branch
      %290 = sbr.rel (0) target = $region45
    $region44: #{tpu_custom_call.1} parent=1 // pred_region
      %292 = vsyncadd [#allocation4], 0
      %s294 = sshll.u32 [#allocation11], 4
      %s295 = int_to_ptr.vmem [resolvable:$true] %s294
      %s296 = sshll.u32 %s5, 4
      %s297 = int_to_ptr.hbm [resolvable:$true] %s296
      %299 = dma.vmem_to_hbm [thread:$0]  %s295, 128, %s297, [#allocation4]
    $region45: #{tpu_custom_call.1} parent=1 // pred_fallthru
      _
    // Predicated region
    $region46: #{tpu_custom_call.1} parent=1 // pred_check
      _
    $region47: #{tpu_custom_call.1} parent=1 // pred_check_branch
      %301 = sbr.rel (0) target = $region49
    $region48: #{tpu_custom_call.1} parent=1 // pred_region
      %303 = dma.done [#allocation4], 128
    $region49: #{tpu_custom_call.1} parent=1 // pred_fallthru
      _
    %304 = vsyncpa [#allocation3], 1
    %305 = vsyncpa [#allocation6], 1
    %306 = vsyncpa [#allocation9], 1
    %307 = vsyncpa [#allocation4], 1

</llo_original>
